<compile_context>
chip_gen: v7x
topology: tpu7x:2x2x1
jax: 0.10.0
libtpu: 0.0.40
codegen_flags: <defaults>
</compile_context>

<pallas_src>
import jax
import jax.numpy as jnp
from jax.experimental import pallas as pl
from jax.experimental.pallas import tpu as pltpu

EPS = 1e-5
NEG_SLOPE = 0.01  # nn.LeakyReLU() default


def _leaky(v):
    return jnp.where(v > 0, v, NEG_SLOPE * v)


def _taps3(x, first_col, last_col):
    """x: (rows, T) -> (3*rows, T) stacked [x[t-1]; x[t]; x[t+1]] ('same' zero pad).

    Shifts use pltpu.roll (XLU rotate slot, otherwise idle here); only the single
    wrapped boundary column of each roll is masked back to zero.
    """
    T = x.shape[1]
    left = jnp.where(first_col, 0.0, pltpu.roll(x, shift=1, axis=1))       # x[t-1]
    right = jnp.where(last_col, 0.0, pltpu.roll(x, shift=T - 1, axis=1))   # x[t+1]
    return jnp.concatenate([left, x, right], axis=0)


def residual_up_block_kernel(up_ref, skip_ref,
                             w1u_ref, w1s_ref, sh1_ref,
                             w2_ref, sh2_ref,
                             wp_ref, bp_ref,
                             out_ref):
    up = up_ref[0]        # (C, T)  upsampled input, channels-first
    sk = skip_ref[0]      # (C, T)  skip connection
    T = up.shape[1]

    col = jax.lax.broadcasted_iota(jnp.int32, (1, T), 1)
    first_col = col == 0
    last_col = col == T - 1

    # Conv1 (2C -> C, k=3) on concat([up, skip], channel) == sum of the two
    # weight halves, each a single fused matmul over a (3C, T) tap stack.
    # BN1 scale is already folded into the weights; shift carries bias/mean/beta.
    h1 = _leaky(
        jnp.dot(w1u_ref[...], _taps3(up, first_col, last_col),
                preferred_element_type=jnp.float32)
        + jnp.dot(w1s_ref[...], _taps3(sk, first_col, last_col),
                  preferred_element_type=jnp.float32)
        + sh1_ref[...])                                                # (C, T)

    # Conv2 (C -> Co, k=3) with folded BN2 scale + LeakyReLU.
    h2 = _leaky(
        jnp.dot(w2_ref[...], _taps3(h1, first_col, last_col),
                preferred_element_type=jnp.float32)
        + sh2_ref[...])                                                # (Co, T)

    # 1x1 projection of `up` + residual add + LeakyReLU.
    proj = (jnp.dot(wp_ref[...], up, preferred_element_type=jnp.float32)
            + bp_ref[...])                                             # (Co, T)
    out_ref[0, :, :] = _leaky(proj + h2)


def _flat3(w):
    # (Cout, Cin, 3) -> (Cout, 3*Cin); contraction order (tap, in_ch) matching
    # the [x[t-1]; x[t]; x[t+1]] row stacking inside the kernel.
    co, ci, k = w.shape
    return jnp.transpose(w, (0, 2, 1)).reshape(co, k * ci)


def residual_up_block(x, skip, params):
    B, C, L = x.shape
    T = 2 * L
    Co = C // 2

    # --- glue (plain JAX): nearest upsample in native NCL layout ---
    # TODO(synk): do this in-kernel (pass x at length L) once a robust f32
    #             lane-interleave (stride-2 store / lane gather) is available.
    up = jnp.repeat(x, 2, axis=2)                                      # (B, C, T)

    # BN (eval mode) folded: scale goes into the conv weights, shift stays.
    sc1 = params['g1'] / jnp.sqrt(params['v1'] + EPS)
    sh1 = (params['b1'] - params['m1']) * sc1 + params['be1']
    sc2 = params['g2'] / jnp.sqrt(params['v2'] + EPS)
    sh2 = (params['b2'] - params['m2']) * sc2 + params['be2']

    w1u = _flat3(params['w1'][:, :C, :]) * sc1[:, None]                # (C, 3C) up half
    w1s = _flat3(params['w1'][:, C:, :]) * sc1[:, None]                # (C, 3C) skip half
    w2 = _flat3(params['w2']) * sc2[:, None]                           # (Co, 3C)
    wp = params['wp'][:, :, 0]                                         # (Co, C)

    args = (up, skip,
            w1u, w1s, sh1.reshape(C, 1),
            w2, sh2.reshape(Co, 1),
            wp, params['bp'].reshape(Co, 1))

    def per_batch(ch):
        return pl.BlockSpec((1, ch, T), lambda b: (b, 0, 0))

    def const2d(shape):
        return pl.BlockSpec(tuple(shape), lambda b: (0, 0))

    in_specs = [per_batch(C), per_batch(C),
                const2d(w1u.shape), const2d(w1s.shape), const2d((C, 1)),
                const2d(w2.shape), const2d((Co, 1)),
                const2d(wp.shape), const2d((Co, 1))]

    flops = 2 * B * T * (6 * C * C + 3 * C * Co + C * Co)
    bytes_accessed = 4 * (B * T * (2 * C + Co) + 9 * C * C)

    # Raise the scoped VMEM limit above the 16/32 MiB default so whole-T
    # per-batch blocks compile for moderate C*T; clamp below ~100 MiB
    # (v5e/v6e physical 128 MiB). For v7x-sized problems prefer T-tiling (TODO).
    work = 4 * T * (2 * (2 * C + Co)      # double-buffered up/skip/out blocks
                    + 6 * C + 2 * Co)     # tap stack + h1/h2/proj live values
    weights = 4 * (6 * C * C + 4 * C * Co + C + 2 * Co)
    vmem_limit = int(min(max(2 * (work + weights), 32 << 20), 100 << 20))

    out = pl.pallas_call(
        residual_up_block_kernel,
        out_shape=jax.ShapeDtypeStruct((B, Co, T), jnp.float32),
        grid_spec=pltpu.PrefetchScalarGridSpec(
            num_scalar_prefetch=0,
            grid=(B,),
            in_specs=in_specs,
            out_specs=pl.BlockSpec((1, Co, T), lambda b: (b, 0, 0)),
        ),
        compiler_params=pltpu.CompilerParams(
            dimension_semantics=("parallel",),
            vmem_limit_bytes=vmem_limit),
        cost_estimate=pl.CostEstimate(flops=flops, transcendentals=0,
                                      bytes_accessed=bytes_accessed),
    )(*args)

    return out  # already NCL: (B, Co, T)


def ref_forward(x, skip, p):
    """Pure-JAX reference (lax.conv) matching the PyTorch module in eval mode."""
    def conv1d(inp, w, b):
        out = jax.lax.conv_general_dilated(
            inp, w, window_strides=(1,), padding='SAME',
            dimension_numbers=('NCH', 'OIH', 'NCH'),
            precision=jax.lax.Precision.HIGHEST)
        return out + b[None, :, None]

    def bn(inp, g, be, m, v):
        return (g[None, :, None] * (inp - m[None, :, None])
                / jnp.sqrt(v[None, :, None] + EPS) + be[None, :, None])

    up = jnp.repeat(x, 2, axis=2)
    cat = jnp.concatenate([up, skip], axis=1)
    h = _leaky(bn(conv1d(cat, p['w1'], p['b1']), p['g1'], p['be1'], p['m1'], p['v1']))
    h = _leaky(bn(conv1d(h, p['w2'], p['b2']), p['g2'], p['be2'], p['m2'], p['v2']))
    proj = conv1d(up, p['wp'], p['bp'])
    return _leaky(proj + h)


if __name__ == "__main__":
    key = jax.random.PRNGKey(0)
    B, C, L = 2, 8, 64          # in_channels = 8, T = 2L = 128 (lane-dense output)
    Co = C // 2
    keys = jax.random.split(key, 16)

    x = jax.random.normal(keys[0], (B, C, L), jnp.float32)
    skip = jax.random.normal(keys[1], (B, C, 2 * L), jnp.float32)

    params = dict(
        # conv[0]: Conv1d(2C -> C, k=3)
        w1=0.2 * jax.random.normal(keys[2], (C, 2 * C, 3), jnp.float32),
        b1=0.1 * jax.random.normal(keys[3], (C,), jnp.float32),
        # BatchNorm1d(C)  (eval-mode running stats)
        g1=1.0 + 0.1 * jax.random.normal(keys[4], (C,), jnp.float32),
        be1=0.1 * jax.random.normal(keys[5], (C,), jnp.float32),
        m1=0.1 * jax.random.normal(keys[6], (C,), jnp.float32),
        v1=1.0 + 0.5 * jax.random.uniform(keys[7], (C,), jnp.float32),
        # conv[3]: Conv1d(C -> Co, k=3)
        w2=0.2 * jax.random.normal(keys[8], (Co, C, 3), jnp.float32),
        b2=0.1 * jax.random.normal(keys[9], (Co,), jnp.float32),
        # BatchNorm1d(Co)
        g2=1.0 + 0.1 * jax.random.normal(keys[10], (Co,), jnp.float32),
        be2=0.1 * jax.random.normal(keys[11], (Co,), jnp.float32),
        m2=0.1 * jax.random.normal(keys[12], (Co,), jnp.float32),
        v2=1.0 + 0.5 * jax.random.uniform(keys[13], (Co,), jnp.float32),
        # proj: Conv1d(C -> Co, k=1)
        wp=0.2 * jax.random.normal(keys[14], (Co, C, 1), jnp.float32),
        bp=0.1 * jax.random.normal(keys[15], (Co,), jnp.float32),
    )

    out = residual_up_block(x, skip, params)
    jax.block_until_ready(out)

    ref = ref_forward(x, skip, params)
    assert out.shape == (B, Co, 2 * L), out.shape
    assert jnp.allclose(out, ref, rtol=1e-3, atol=1e-3), \
        float(jnp.max(jnp.abs(out - ref)))
    print("KERNEL_OK")
</pallas_src>

<mosaic_0001>
module attributes {stable_mosaic.version = 11 : i64} {
  func.func @residual_up_block_kernel(%arg0: i32, %arg1: memref<1x8x128xf32, #tpu.memory_space<vmem>>, %arg2: memref<1x8x128xf32, #tpu.memory_space<vmem>>, %arg3: memref<8x24xf32, #tpu.memory_space<vmem>>, %arg4: memref<8x24xf32, #tpu.memory_space<vmem>>, %arg5: memref<8x1xf32, #tpu.memory_space<vmem>>, %arg6: memref<4x24xf32, #tpu.memory_space<vmem>>, %arg7: memref<4x1xf32, #tpu.memory_space<vmem>>, %arg8: memref<4x8xf32, #tpu.memory_space<vmem>>, %arg9: memref<4x1xf32, #tpu.memory_space<vmem>>, %arg10: memref<1x4x128xf32, #tpu.memory_space<vmem>>) attributes {dimension_semantics = [#tpu.dimension_semantics<parallel>], iteration_bounds = array<i64: 2>, scalar_prefetch = 0 : i64, scratch_operands = 0 : i64, tpu.core_type = #tpu.core_type<tc>, window_params = [{transform_indices = @transform_0, window_bounds = array<i64: 1, 8, 128>}, {transform_indices = @transform_1, window_bounds = array<i64: 1, 8, 128>}, {pipeline_mode = #tpu.pipeline_mode<synchronous>, transform_indices = @transform_2, window_bounds = array<i64: 8, 24>}, {pipeline_mode = #tpu.pipeline_mode<synchronous>, transform_indices = @transform_3, window_bounds = array<i64: 8, 24>}, {pipeline_mode = #tpu.pipeline_mode<synchronous>, transform_indices = @transform_4, window_bounds = array<i64: 8, 1>}, {pipeline_mode = #tpu.pipeline_mode<synchronous>, transform_indices = @transform_5, window_bounds = array<i64: 4, 24>}, {pipeline_mode = #tpu.pipeline_mode<synchronous>, transform_indices = @transform_6, window_bounds = array<i64: 4, 1>}, {pipeline_mode = #tpu.pipeline_mode<synchronous>, transform_indices = @transform_7, window_bounds = array<i64: 4, 8>}, {pipeline_mode = #tpu.pipeline_mode<synchronous>, transform_indices = @transform_8, window_bounds = array<i64: 4, 1>}, {transform_indices = @transform_9, window_bounds = array<i64: 1, 4, 128>}]} {
    %c0 = arith.constant 0 : index
    %c0_0 = arith.constant 0 : index
    %c0_1 = arith.constant 0 : index
    %0 = vector.load %arg1[%c0, %c0_0, %c0_1] : memref<1x8x128xf32, #tpu.memory_space<vmem>>, vector<1x8x128xf32>
    %1 = vector.shape_cast %0 : vector<1x8x128xf32> to vector<8x128xf32>
    %c0_2 = arith.constant 0 : index
    %c0_3 = arith.constant 0 : index
    %c0_4 = arith.constant 0 : index
    %2 = vector.load %arg2[%c0_2, %c0_3, %c0_4] : memref<1x8x128xf32, #tpu.memory_space<vmem>>, vector<1x8x128xf32>
    %3 = vector.shape_cast %2 : vector<1x8x128xf32> to vector<8x128xf32>
    %4 = tpu.iota {dimensions = array<i32: 1>} : vector<1x128xi32>
    %c0_i32 = arith.constant 0 : i32
    %5 = vector.broadcast %c0_i32 : i32 to vector<1x128xi32>
    %6 = arith.cmpi eq, %4, %5 : vector<1x128xi32>
    %c127_i32 = arith.constant 127 : i32
    %7 = vector.broadcast %c127_i32 : i32 to vector<1x128xi32>
    %8 = arith.cmpi eq, %4, %7 : vector<1x128xi32>
    %c0_5 = arith.constant 0 : index
    %c0_6 = arith.constant 0 : index
    %9 = vector.load %arg3[%c0_5, %c0_6] : memref<8x24xf32, #tpu.memory_space<vmem>>, vector<8x24xf32>
    %c1_i32 = arith.constant 1 : i32
    %10 = tpu.dynamic_rotate %1 by %c1_i32 dim 1 : vector<8x128xf32>, i32 -> vector<8x128xf32>
    %cst = arith.constant 0.000000e+00 : f32
    %11 = vector.shape_cast %6 : vector<1x128xi1> to vector<1x128xi1>
    %12 = vector.broadcast %11 : vector<1x128xi1> to vector<8x128xi1>
    %13 = vector.broadcast %cst : f32 to vector<8x128xf32>
    %14 = arith.select %12, %13, %10 : vector<8x128xi1>, vector<8x128xf32>
    %c127_i32_7 = arith.constant 127 : i32
    %15 = tpu.dynamic_rotate %1 by %c127_i32_7 dim 1 : vector<8x128xf32>, i32 -> vector<8x128xf32>
    %cst_8 = arith.constant 0.000000e+00 : f32
    %16 = vector.shape_cast %8 : vector<1x128xi1> to vector<1x128xi1>
    %17 = vector.broadcast %16 : vector<1x128xi1> to vector<8x128xi1>
    %18 = vector.broadcast %cst_8 : f32 to vector<8x128xf32>
    %19 = arith.select %17, %18, %15 : vector<8x128xi1>, vector<8x128xf32>
    %20 = tpu.concatenate %14, %1, %19 in 0 : vector<8x128xf32>, vector<8x128xf32>, vector<8x128xf32> -> vector<24x128xf32>
    %cst_9 = arith.constant dense<0.000000e+00> : vector<8x128xf32>
    %21 = tpu.matmul %9, %20, %cst_9 {dimension_numbers = #tpu.dot_dimension_numbers<[1], [0], [0], [1], [0, 0, 1, 1], [], []>} : vector<8x24xf32>, vector<24x128xf32>, vector<8x128xf32> -> vector<8x128xf32>
    %c0_10 = arith.constant 0 : index
    %c0_11 = arith.constant 0 : index
    %22 = vector.load %arg4[%c0_10, %c0_11] : memref<8x24xf32, #tpu.memory_space<vmem>>, vector<8x24xf32>
    %c1_i32_12 = arith.constant 1 : i32
    %23 = tpu.dynamic_rotate %3 by %c1_i32_12 dim 1 : vector<8x128xf32>, i32 -> vector<8x128xf32>
    %cst_13 = arith.constant 0.000000e+00 : f32
    %24 = vector.shape_cast %6 : vector<1x128xi1> to vector<1x128xi1>
    %25 = vector.broadcast %24 : vector<1x128xi1> to vector<8x128xi1>
    %26 = vector.broadcast %cst_13 : f32 to vector<8x128xf32>
    %27 = arith.select %25, %26, %23 : vector<8x128xi1>, vector<8x128xf32>
    %c127_i32_14 = arith.constant 127 : i32
    %28 = tpu.dynamic_rotate %3 by %c127_i32_14 dim 1 : vector<8x128xf32>, i32 -> vector<8x128xf32>
    %cst_15 = arith.constant 0.000000e+00 : f32
    %29 = vector.shape_cast %8 : vector<1x128xi1> to vector<1x128xi1>
    %30 = vector.broadcast %29 : vector<1x128xi1> to vector<8x128xi1>
    %31 = vector.broadcast %cst_15 : f32 to vector<8x128xf32>
    %32 = arith.select %30, %31, %28 : vector<8x128xi1>, vector<8x128xf32>
    %33 = tpu.concatenate %27, %3, %32 in 0 : vector<8x128xf32>, vector<8x128xf32>, vector<8x128xf32> -> vector<24x128xf32>
    %cst_16 = arith.constant dense<0.000000e+00> : vector<8x128xf32>
    %34 = tpu.matmul %22, %33, %cst_16 {dimension_numbers = #tpu.dot_dimension_numbers<[1], [0], [0], [1], [0, 0, 1, 1], [], []>} : vector<8x24xf32>, vector<24x128xf32>, vector<8x128xf32> -> vector<8x128xf32>
    %35 = arith.addf %21, %34 : vector<8x128xf32>
    %c0_17 = arith.constant 0 : index
    %c0_18 = arith.constant 0 : index
    %36 = vector.load %arg5[%c0_17, %c0_18] : memref<8x1xf32, #tpu.memory_space<vmem>>, vector<8x1xf32>
    %37 = vector.broadcast %36 : vector<8x1xf32> to vector<8x128xf32>
    %38 = arith.addf %35, %37 : vector<8x128xf32>
    %cst_19 = arith.constant 0.000000e+00 : f32
    %39 = vector.broadcast %cst_19 : f32 to vector<8x128xf32>
    %40 = arith.cmpf ogt, %38, %39 : vector<8x128xf32>
    %cst_20 = arith.constant 0.00999999977 : f32
    %41 = vector.broadcast %cst_20 : f32 to vector<8x128xf32>
    %42 = arith.mulf %41, %38 : vector<8x128xf32>
    %43 = arith.select %40, %38, %42 : vector<8x128xi1>, vector<8x128xf32>
    %c0_21 = arith.constant 0 : index
    %c0_22 = arith.constant 0 : index
    %44 = vector.load %arg6[%c0_21, %c0_22] : memref<4x24xf32, #tpu.memory_space<vmem>>, vector<4x24xf32>
    %c1_i32_23 = arith.constant 1 : i32
    %45 = tpu.dynamic_rotate %43 by %c1_i32_23 dim 1 : vector<8x128xf32>, i32 -> vector<8x128xf32>
    %cst_24 = arith.constant 0.000000e+00 : f32
    %46 = vector.shape_cast %6 : vector<1x128xi1> to vector<1x128xi1>
    %47 = vector.broadcast %46 : vector<1x128xi1> to vector<8x128xi1>
    %48 = vector.broadcast %cst_24 : f32 to vector<8x128xf32>
    %49 = arith.select %47, %48, %45 : vector<8x128xi1>, vector<8x128xf32>
    %c127_i32_25 = arith.constant 127 : i32
    %50 = tpu.dynamic_rotate %43 by %c127_i32_25 dim 1 : vector<8x128xf32>, i32 -> vector<8x128xf32>
    %cst_26 = arith.constant 0.000000e+00 : f32
    %51 = vector.shape_cast %8 : vector<1x128xi1> to vector<1x128xi1>
    %52 = vector.broadcast %51 : vector<1x128xi1> to vector<8x128xi1>
    %53 = vector.broadcast %cst_26 : f32 to vector<8x128xf32>
    %54 = arith.select %52, %53, %50 : vector<8x128xi1>, vector<8x128xf32>
    %55 = tpu.concatenate %49, %43, %54 in 0 : vector<8x128xf32>, vector<8x128xf32>, vector<8x128xf32> -> vector<24x128xf32>
    %cst_27 = arith.constant dense<0.000000e+00> : vector<4x128xf32>
    %56 = tpu.matmul %44, %55, %cst_27 {dimension_numbers = #tpu.dot_dimension_numbers<[1], [0], [0], [1], [0, 0, 1, 1], [], []>} : vector<4x24xf32>, vector<24x128xf32>, vector<4x128xf32> -> vector<4x128xf32>
    %c0_28 = arith.constant 0 : index
    %c0_29 = arith.constant 0 : index
    %57 = vector.load %arg7[%c0_28, %c0_29] : memref<4x1xf32, #tpu.memory_space<vmem>>, vector<4x1xf32>
    %58 = vector.broadcast %57 : vector<4x1xf32> to vector<4x128xf32>
    %59 = arith.addf %56, %58 : vector<4x128xf32>
    %cst_30 = arith.constant 0.000000e+00 : f32
    %60 = vector.broadcast %cst_30 : f32 to vector<4x128xf32>
    %61 = arith.cmpf ogt, %59, %60 : vector<4x128xf32>
    %cst_31 = arith.constant 0.00999999977 : f32
    %62 = vector.broadcast %cst_31 : f32 to vector<4x128xf32>
    %63 = arith.mulf %62, %59 : vector<4x128xf32>
    %64 = arith.select %61, %59, %63 : vector<4x128xi1>, vector<4x128xf32>
    %c0_32 = arith.constant 0 : index
    %c0_33 = arith.constant 0 : index
    %65 = vector.load %arg8[%c0_32, %c0_33] : memref<4x8xf32, #tpu.memory_space<vmem>>, vector<4x8xf32>
    %cst_34 = arith.constant dense<0.000000e+00> : vector<4x128xf32>
    %66 = tpu.matmul %65, %1, %cst_34 {dimension_numbers = #tpu.dot_dimension_numbers<[1], [0], [0], [1], [0, 0, 1, 1], [], []>} : vector<4x8xf32>, vector<8x128xf32>, vector<4x128xf32> -> vector<4x128xf32>
    %c0_35 = arith.constant 0 : index
    %c0_36 = arith.constant 0 : index
    %67 = vector.load %arg9[%c0_35, %c0_36] : memref<4x1xf32, #tpu.memory_space<vmem>>, vector<4x1xf32>
    %68 = vector.broadcast %67 : vector<4x1xf32> to vector<4x128xf32>
    %69 = arith.addf %66, %68 : vector<4x128xf32>
    %70 = arith.addf %69, %64 : vector<4x128xf32>
    %cst_37 = arith.constant 0.000000e+00 : f32
    %71 = vector.broadcast %cst_37 : f32 to vector<4x128xf32>
    %72 = arith.cmpf ogt, %70, %71 : vector<4x128xf32>
    %cst_38 = arith.constant 0.00999999977 : f32
    %73 = vector.broadcast %cst_38 : f32 to vector<4x128xf32>
    %74 = arith.mulf %73, %70 : vector<4x128xf32>
    %75 = arith.select %72, %70, %74 : vector<4x128xi1>, vector<4x128xf32>
    %c0_39 = arith.constant 0 : index
    %c0_40 = arith.constant 0 : index
    %c0_41 = arith.constant 0 : index
    %76 = vector.load %arg10[%c0_39, %c0_40, %c0_41] : memref<1x4x128xf32, #tpu.memory_space<vmem>>, vector<1x4x128xf32>
    %77 = vector.shape_cast %76 : vector<1x4x128xf32> to vector<4x128xf32>
    %78 = vector.shape_cast %75 : vector<4x128xf32> to vector<1x4x128xf32>
    tpu.vector_store %arg10[%c0_39, %c0_40, %c0_41], %78 {strides = array<i32>} : memref<1x4x128xf32, #tpu.memory_space<vmem>>, vector<1x4x128xf32>,
    return
  }
  func.func @transform_0(%arg0: i32) -> (i32, i32, i32) {
    %c0_i32 = arith.constant 0 : i32
    %c0_i32_0 = arith.constant 0 : i32
    %c0_i32_1 = arith.constant 0 : i32
    return %arg0, %c0_i32, %c0_i32_0 : i32, i32, i32
  }
  func.func @transform_1(%arg0: i32) -> (i32, i32, i32) {
    %c0_i32 = arith.constant 0 : i32
    %c0_i32_0 = arith.constant 0 : i32
    %c0_i32_1 = arith.constant 0 : i32
    return %arg0, %c0_i32, %c0_i32_0 : i32, i32, i32
  }
  func.func @transform_2(%arg0: i32) -> (i32, i32) {
    %c0_i32 = arith.constant 0 : i32
    %c0_i32_0 = arith.constant 0 : i32
    %c0_i32_1 = arith.constant 0 : i32
    return %c0_i32, %c0_i32_0 : i32, i32
  }
  func.func @transform_3(%arg0: i32) -> (i32, i32) {
    %c0_i32 = arith.constant 0 : i32
    %c0_i32_0 = arith.constant 0 : i32
    %c0_i32_1 = arith.constant 0 : i32
    return %c0_i32, %c0_i32_0 : i32, i32
  }
  func.func @transform_4(%arg0: i32) -> (i32, i32) {
    %c0_i32 = arith.constant 0 : i32
    %c0_i32_0 = arith.constant 0 : i32
    %c0_i32_1 = arith.constant 0 : i32
    return %c0_i32, %c0_i32_0 : i32, i32
  }
  func.func @transform_5(%arg0: i32) -> (i32, i32) {
    %c0_i32 = arith.constant 0 : i32
    %c0_i32_0 = arith.constant 0 : i32
    %c0_i32_1 = arith.constant 0 : i32
    return %c0_i32, %c0_i32_0 : i32, i32
  }
  func.func @transform_6(%arg0: i32) -> (i32, i32) {
    %c0_i32 = arith.constant 0 : i32
    %c0_i32_0 = arith.constant 0 : i32
    %c0_i32_1 = arith.constant 0 : i32
    return %c0_i32, %c0_i32_0 : i32, i32
  }
  func.func @transform_7(%arg0: i32) -> (i32, i32) {
    %c0_i32 = arith.constant 0 : i32
    %c0_i32_0 = arith.constant 0 : i32
    %c0_i32_1 = arith.constant 0 : i32
    return %c0_i32, %c0_i32_0 : i32, i32
  }
  func.func @transform_8(%arg0: i32) -> (i32, i32) {
    %c0_i32 = arith.constant 0 : i32
    %c0_i32_0 = arith.constant 0 : i32
    %c0_i32_1 = arith.constant 0 : i32
    return %c0_i32, %c0_i32_0 : i32, i32
  }
  func.func @transform_9(%arg0: i32) -> (i32, i32, i32) {
    %c0_i32 = arith.constant 0 : i32
    %c0_i32_0 = arith.constant 0 : i32
    %c0_i32_1 = arith.constant 0 : i32
    return %arg0, %c0_i32, %c0_i32_0 : i32, i32, i32
  }
}

</mosaic_0001>

<llo_original>
// kernel: tpu_custom_call.1
$region0: #{tpu_custom_call.1}
  #allocation0 [shape = 'u32[]', space=smem, size = 0x4, offset = 0x4, fixed_abs, tag = 'smem constant byte address 0x4 - core index']
  #allocation1 [shape = 'u32[144,128]{1,0:T(1,128)}', space=vmem, size = 0x12000, scoped, tag = 'internal scratch']
  %s0 = inlined_call_operand.vmem [shape: f32[2,8,128], index: 0, kind: input, shape index: {}]
  %s1 = inlined_call_operand.hbm [shape: f32[2,8,128], index: 1, kind: input, shape index: {}]
  %s2 = inlined_call_operand.vmem [shape: f32[8,24], index: 2, kind: input, shape index: {}]
  %s3 = inlined_call_operand.hbm [shape: f32[8,24], index: 3, kind: input, shape index: {}]
  %s4 = inlined_call_operand.vmem [shape: f32[8,1], index: 4, kind: input, shape index: {}]
  %s5 = inlined_call_operand.vmem [shape: f32[4,24], index: 5, kind: input, shape index: {}]
  %s6 = inlined_call_operand.vmem [shape: f32[4,1], index: 6, kind: input, shape index: {}]
  %s7 = inlined_call_operand.vmem [shape: f32[4,8], index: 7, kind: input, shape index: {}]
  %s8 = inlined_call_operand.vmem [shape: f32[4,1], index: 8, kind: input, shape index: {}]
  %s9 = inlined_call_operand.hbm [shape: f32[2,4,128], index: 9, kind: output, shape index: {}]
  %s10 = sld [smem:[#allocation0]]
  $region77: #{tpu_custom_call.1} parent=0
    _
  %s12 = ssub.s32 1, %s10
  %s13 = scalar_select 0, %s12, %s10
  $region1: #{tpu_custom_call.1} parent=0
    #allocation2 [shape = 'u8[8192]{0}', space=vmem, size = 0x2000, scoped, tag = 'input window, operand 1']
    #allocation3 [shape = 's32[2]{0}', space=sflag, size = 0x8, scoped, tag = 'scoped memory for tpu_custom_call.1']
    #allocation4 [shape = 's32[2]{0}', space=sflag, size = 0x8, scoped, tag = 'scoped memory for tpu_custom_call.1']
    #allocation5 [shape = 'u8[4096]{0}', space=vmem, size = 0x1000, scoped, tag = 'input window, operand 3, single buffered']
    #allocation6 [shape = 's32[1]{0}', space=sflag, size = 0x4, scoped, tag = 'scoped memory for tpu_custom_call.1']
    #allocation7 [shape = 'u8[4096]{0}', space=vmem, size = 0x1000, scoped, tag = 'output window, operand 0']
    %14 = vsyncpa [#allocation3], 0
    %s15 = scalar_lea.sflag [#allocation3], 1
    %16 = vsyncpa %s15, 0
    %17 = vsyncpa [#allocation6], 0
    %18 = vsyncpa [#allocation4], 0
    %s19 = scalar_lea.sflag [#allocation4], 1
    %20 = vsyncpa %s19, 0
    loop: start=0, step=1, limit=4
    $region2: #{tpu_custom_call.1} parent=1 // loop_pre_header
      _
    $region3: #{tpu_custom_call.1} parent=1 // loop_header
      %s22 = sphi 0, %s26
      %p23 = scmp.ge.s32.totalorder %s22, 4
      %s32 = sphi 0, %s34
      %s35 = sphi 0, %s32
      %s36 = sphi 0, %s35
      %s52 = sphi 0, %s36
      %s58 = sphi 0, %s60
      %s61 = sphi 0, %s58
      %s62 = sphi 0, %s61
      %s78 = sphi 0, %s62
      %s82 = sphi 0, %s82
      %s84 = sphi 0, %s82
      %s85 = sphi 0, %s84
      %s99 = sphi 0, %s85
      %s103 = sphi 0, %s103
      %s105 = sphi 0, %s103
      %s106 = sphi 0, %s105
      %s120 = sphi 0, %s106
      %s124 = sphi 0, %s124
      %s126 = sphi 0, %s124
      %s127 = sphi 0, %s126
      %s141 = sphi 0, %s127
      %s145 = sphi 0, %s145
      %s147 = sphi 0, %s145
      %s148 = sphi 0, %s147
      %s162 = sphi 0, %s148
      %s166 = sphi 0, %s166
      %s168 = sphi 0, %s166
      %s169 = sphi 0, %s168
      %s183 = sphi 0, %s169
      %s187 = sphi 0, %s187
      %s189 = sphi 0, %s187
      %s190 = sphi 0, %s189
      %s204 = sphi 0, %s190
      %s208 = sphi 0, %s208
      %s210 = sphi 0, %s208
      %s211 = sphi 0, %s210
      %s225 = sphi 0, %s211
      %s231 = sphi 0, %s233
      %s234 = sphi 0, %s231
      %s235 = sphi 0, %s234
      %s251 = sphi 0, %s235
    $region4: #{tpu_custom_call.1} parent=1 // loop_header_branch
      %25 = sbr.rel (%p23) target = $region8
    $region5: #{tpu_custom_call.1} parent=1 // loop_body
      %s27 = ssub.s32 %s22, 1
      %s28 = ssub.s32 %s22, 2
      %s29 = sadd.s32 %s22, 1
      %s30 = ssub.s32 %s22, %s29
      %p31 = scmp.eq.s32.totalorder %s30, 0
      %s33 = sadd.s32 %s32, 1
      %s34 = scalar_select %p31, %s32, %s33
      %p37 = pneg %p31
      %p38 = scmp.eq.s32.totalorder %s22, 1
      %p39 = por %p37, %p38
      %p40 = scmp.ne.s32.totalorder %s32, %s35
      %p41 = scmp.eq.s32.totalorder %s22, 0
      %p42 = por %p40, %p41
      %p43 = scmp.ne.s32.totalorder %s32, %s35
      %p44 = scmp.eq.s32.totalorder %s27, 1
      %p45 = por %p43, %p44
      %p46 = scmp.ne.s32.totalorder %s35, %s36
      %p47 = scmp.eq.s32.totalorder %s27, 0
      %p48 = por %p46, %p47
      %p49 = scmp.ne.s32.totalorder %s35, %s36
      %p50 = scmp.eq.s32.totalorder %s28, 1
      %p51 = por %p49, %p50
      %p53 = scmp.ne.s32.totalorder %s36, %s52
      %p54 = scmp.eq.s32.totalorder %s28, 0
      %p55 = por %p53, %p54
      %s56 = ssub.s32 %s22, %s29
      %p57 = scmp.eq.s32.totalorder %s56, 0
      %s59 = sadd.s32 %s58, 1
      %s60 = scalar_select %p57, %s58, %s59
      %p63 = pneg %p57
      %p64 = scmp.eq.s32.totalorder %s22, 1
      %p65 = por %p63, %p64
      %p66 = scmp.ne.s32.totalorder %s58, %s61
      %p67 = scmp.eq.s32.totalorder %s22, 0
      %p68 = por %p66, %p67
      %p69 = scmp.ne.s32.totalorder %s58, %s61
      %p70 = scmp.eq.s32.totalorder %s27, 1
      %p71 = por %p69, %p70
      %p72 = scmp.ne.s32.totalorder %s61, %s62
      %p73 = scmp.eq.s32.totalorder %s27, 0
      %p74 = por %p72, %p73
      %p75 = scmp.ne.s32.totalorder %s61, %s62
      %p76 = scmp.eq.s32.totalorder %s28, 1
      %p77 = por %p75, %p76
      %p79 = scmp.ne.s32.totalorder %s62, %s78
      %p80 = scmp.eq.s32.totalorder %s28, 0
      %p81 = por %p79, %p80
      %s83 = sadd.s32 %s82, 1
      %p86 = scmp.eq.s32.totalorder %s22, 1
      %p87 = scmp.ne.s32.totalorder %s82, %s84
      %p88 = scmp.eq.s32.totalorder %s22, 0
      %p89 = por %p87, %p88
      %p90 = scmp.ne.s32.totalorder %s82, %s84
      %p91 = scmp.eq.s32.totalorder %s27, 1
      %p92 = por %p90, %p91
      %p93 = scmp.ne.s32.totalorder %s84, %s85
      %p94 = scmp.eq.s32.totalorder %s27, 0
      %p95 = por %p93, %p94
      %p96 = scmp.ne.s32.totalorder %s84, %s85
      %p97 = scmp.eq.s32.totalorder %s28, 1
      %p98 = por %p96, %p97
      %p100 = scmp.ne.s32.totalorder %s85, %s99
      %p101 = scmp.eq.s32.totalorder %s28, 0
      %p102 = por %p100, %p101
      %s104 = sadd.s32 %s103, 1
      %p107 = scmp.eq.s32.totalorder %s22, 1
      %p108 = scmp.ne.s32.totalorder %s103, %s105
      %p109 = scmp.eq.s32.totalorder %s22, 0
      %p110 = por %p108, %p109
      %p111 = scmp.ne.s32.totalorder %s103, %s105
      %p112 = scmp.eq.s32.totalorder %s27, 1
      %p113 = por %p111, %p112
      %p114 = scmp.ne.s32.totalorder %s105, %s106
      %p115 = scmp.eq.s32.totalorder %s27, 0
      %p116 = por %p114, %p115
      %p117 = scmp.ne.s32.totalorder %s105, %s106
      %p118 = scmp.eq.s32.totalorder %s28, 1
      %p119 = por %p117, %p118
      %p121 = scmp.ne.s32.totalorder %s106, %s120
      %p122 = scmp.eq.s32.totalorder %s28, 0
      %p123 = por %p121, %p122
      %s125 = sadd.s32 %s124, 1
      %p128 = scmp.eq.s32.totalorder %s22, 1
      %p129 = scmp.ne.s32.totalorder %s124, %s126
      %p130 = scmp.eq.s32.totalorder %s22, 0
      %p131 = por %p129, %p130
      %p132 = scmp.ne.s32.totalorder %s124, %s126
      %p133 = scmp.eq.s32.totalorder %s27, 1
      %p134 = por %p132, %p133
      %p135 = scmp.ne.s32.totalorder %s126, %s127
      %p136 = scmp.eq.s32.totalorder %s27, 0
      %p137 = por %p135, %p136
      %p138 = scmp.ne.s32.totalorder %s126, %s127
      %p139 = scmp.eq.s32.totalorder %s28, 1
      %p140 = por %p138, %p139
      %p142 = scmp.ne.s32.totalorder %s127, %s141
      %p143 = scmp.eq.s32.totalorder %s28, 0
      %p144 = por %p142, %p143
      %s146 = sadd.s32 %s145, 1
      %p149 = scmp.eq.s32.totalorder %s22, 1
      %p150 = scmp.ne.s32.totalorder %s145, %s147
      %p151 = scmp.eq.s32.totalorder %s22, 0
      %p152 = por %p150, %p151
      %p153 = scmp.ne.s32.totalorder %s145, %s147
      %p154 = scmp.eq.s32.totalorder %s27, 1
      %p155 = por %p153, %p154
      %p156 = scmp.ne.s32.totalorder %s147, %s148
      %p157 = scmp.eq.s32.totalorder %s27, 0
      %p158 = por %p156, %p157
      %p159 = scmp.ne.s32.totalorder %s147, %s148
      %p160 = scmp.eq.s32.totalorder %s28, 1
      %p161 = por %p159, %p160
      %p163 = scmp.ne.s32.totalorder %s148, %s162
      %p164 = scmp.eq.s32.totalorder %s28, 0
      %p165 = por %p163, %p164
      %s167 = sadd.s32 %s166, 1
      %p170 = scmp.eq.s32.totalorder %s22, 1
      %p171 = scmp.ne.s32.totalorder %s166, %s168
      %p172 = scmp.eq.s32.totalorder %s22, 0
      %p173 = por %p171, %p172
      %p174 = scmp.ne.s32.totalorder %s166, %s168
      %p175 = scmp.eq.s32.totalorder %s27, 1
      %p176 = por %p174, %p175
      %p177 = scmp.ne.s32.totalorder %s168, %s169
      %p178 = scmp.eq.s32.totalorder %s27, 0
      %p179 = por %p177, %p178
      %p180 = scmp.ne.s32.totalorder %s168, %s169
      %p181 = scmp.eq.s32.totalorder %s28, 1
      %p182 = por %p180, %p181
      %p184 = scmp.ne.s32.totalorder %s169, %s183
      %p185 = scmp.eq.s32.totalorder %s28, 0
      %p186 = por %p184, %p185
      %s188 = sadd.s32 %s187, 1
      %p191 = scmp.eq.s32.totalorder %s22, 1
      %p192 = scmp.ne.s32.totalorder %s187, %s189
      %p193 = scmp.eq.s32.totalorder %s22, 0
      %p194 = por %p192, %p193
      %p195 = scmp.ne.s32.totalorder %s187, %s189
      %p196 = scmp.eq.s32.totalorder %s27, 1
      %p197 = por %p195, %p196
      %p198 = scmp.ne.s32.totalorder %s189, %s190
      %p199 = scmp.eq.s32.totalorder %s27, 0
      %p200 = por %p198, %p199
      %p201 = scmp.ne.s32.totalorder %s189, %s190
      %p202 = scmp.eq.s32.totalorder %s28, 1
      %p203 = por %p201, %p202
      %p205 = scmp.ne.s32.totalorder %s190, %s204
      %p206 = scmp.eq.s32.totalorder %s28, 0
      %p207 = por %p205, %p206
      %s209 = sadd.s32 %s208, 1
      %p212 = scmp.eq.s32.totalorder %s22, 1
      %p213 = scmp.ne.s32.totalorder %s208, %s210
      %p214 = scmp.eq.s32.totalorder %s22, 0
      %p215 = por %p213, %p214
      %p216 = scmp.ne.s32.totalorder %s208, %s210
      %p217 = scmp.eq.s32.totalorder %s27, 1
      %p218 = por %p216, %p217
      %p219 = scmp.ne.s32.totalorder %s210, %s211
      %p220 = scmp.eq.s32.totalorder %s27, 0
      %p221 = por %p219, %p220
      %p222 = scmp.ne.s32.totalorder %s210, %s211
      %p223 = scmp.eq.s32.totalorder %s28, 1
      %p224 = por %p222, %p223
      %p226 = scmp.ne.s32.totalorder %s211, %s225
      %p227 = scmp.eq.s32.totalorder %s28, 0
      %p228 = por %p226, %p227
      %s229 = ssub.s32 %s22, %s29
      %p230 = scmp.eq.s32.totalorder %s229, 0
      %s232 = sadd.s32 %s231, 1
      %s233 = scalar_select %p230, %s231, %s232
      %p236 = pneg %p230
      %p237 = scmp.eq.s32.totalorder %s22, 1
      %p238 = por %p236, %p237
      %p239 = scmp.ne.s32.totalorder %s231, %s234
      %p240 = scmp.eq.s32.totalorder %s22, 0
      %p241 = por %p239, %p240
      %p242 = scmp.ne.s32.totalorder %s231, %s234
      %p243 = scmp.eq.s32.totalorder %s27, 1
      %p244 = por %p242, %p243
      %p245 = scmp.ne.s32.totalorder %s234, %s235
      %p246 = scmp.eq.s32.totalorder %s27, 0
      %p247 = por %p245, %p246
      %p248 = scmp.ne.s32.totalorder %s234, %s235
      %p249 = scmp.eq.s32.totalorder %s28, 1
      %p250 = por %p248, %p249
      %p252 = scmp.ne.s32.totalorder %s235, %s251
      %p253 = scmp.eq.s32.totalorder %s28, 0
      %p254 = por %p252, %p253
      %p255 = scmp.le.s32.totalorder 1, %s22
      %p256 = scmp.lt.s32.totalorder %s22, 3
      %p257 = pnand %p255, %p256
      %p258 = pneg %p257
      // Predicated region
      $region9: #{tpu_custom_call.1} parent=5 // pred_check
        _
      $region10: #{tpu_custom_call.1} parent=5 // pred_check_branch
        %260 = sbr.rel (%p257) target = $region12
      $region11: #{tpu_custom_call.1} parent=5 // pred_region
        %s261 = ssub.s32 %s22, 1
        // Predicated region
        $region13: #{tpu_custom_call.1} parent=11 // pred_check
          %p262 = pneg %p95
        $region14: #{tpu_custom_call.1} parent=11 // pred_check_branch
          %264 = sbr.rel (%p262) target = $region16
        $region15: #{tpu_custom_call.1} parent=11 // pred_region
          _
        $region16: #{tpu_custom_call.1} parent=11 // pred_fallthru
          _
        // Predicated region
        $region17: #{tpu_custom_call.1} parent=11 // pred_check
          %p265 = pneg %p116
        $region18: #{tpu_custom_call.1} parent=11 // pred_check_branch
          %267 = sbr.rel (%p265) target = $region20
        $region19: #{tpu_custom_call.1} parent=11 // pred_region
          %s269 = ssub.s32 128, 128
          %270 = vsyncadd [#allocation6], %s269
          %s272 = sshll.u32 [#allocation5], 4
          %s273 = int_to_ptr.vmem [resolvable:$true] %s272
          %275 = dma.hbm_to_vmem [thread:$0]  %s3, 128, %s273, [#allocation6]
        $region20: #{tpu_custom_call.1} parent=11 // pred_fallthru
          _
        // Predicated region
        $region21: #{tpu_custom_call.1} parent=11 // pred_check
          %p276 = pneg %p137
        $region22: #{tpu_custom_call.1} parent=11 // pred_check_branch
          %278 = sbr.rel (%p276) target = $region24
        $region23: #{tpu_custom_call.1} parent=11 // pred_region
          _
        $region24: #{tpu_custom_call.1} parent=11 // pred_fallthru
          _
        // Predicated region
        $region25: #{tpu_custom_call.1} parent=11 // pred_check
          %p279 = pneg %p158
        $region26: #{tpu_custom_call.1} parent=11 // pred_check_branch
          %281 = sbr.rel (%p279) target = $region28
        $region27: #{tpu_custom_call.1} parent=11 // pred_region
          _
        $region28: #{tpu_custom_call.1} parent=11 // pred_fallthru
          _
        // Predicated region
        $region29: #{tpu_custom_call.1} parent=11 // pred_check
          %p282 = pneg %p179
        $region30: #{tpu_custom_call.1} parent=11 // pred_check_branch
          %284 = sbr.rel (%p282) target = $region32
        $region31: #{tpu_custom_call.1} parent=11 // pred_region
          _
        $region32: #{tpu_custom_call.1} parent=11 // pred_fallthru
          _
        // Predicated region
        $region33: #{tpu_custom_call.1} parent=11 // pred_check
          %p285 = pneg %p200
        $region34: #{tpu_custom_call.1} parent=11 // pred_check_branch
          %287 = sbr.rel (%p285) target = $region36
        $region35: #{tpu_custom_call.1} parent=11 // pred_region
          _
        $region36: #{tpu_custom_call.1} parent=11 // pred_fallthru
          _
        // Predicated region
        $region37: #{tpu_custom_call.1} parent=11 // pred_check
          %p288 = pneg %p221
        $region38: #{tpu_custom_call.1} parent=11 // pred_check_branch
          %290 = sbr.rel (%p288) target = $region40
        $region39: #{tpu_custom_call.1} parent=11 // pred_region
          _
        $region40: #{tpu_custom_call.1} parent=11 // pred_fallthru
          _
      $region12: #{tpu_custom_call.1} parent=5 // pred_fallthru
        _
      %p291 = scmp.lt.s32.totalorder %s22, 2
      // Predicated region
      $region41: #{tpu_custom_call.1} parent=5 // pred_check
        %p292 = pneg %p291
      $region42: #{tpu_custom_call.1} parent=5 // pred_check_branch
        %294 = sbr.rel (%p292) target = $region44
      $region43: #{tpu_custom_call.1} parent=5 // pred_region
        // Predicated region
        $region45: #{tpu_custom_call.1} parent=43 // pred_check
          %p295 = pneg %p42
        $region46: #{tpu_custom_call.1} parent=43 // pred_check_branch
          %297 = sbr.rel (%p295) target = $region48
        $region47: #{tpu_custom_call.1} parent=43 // pred_region
          %p298 = scmp.lt.s32.totalorder %s22, 1
          %s299 = scalar_select %p298, %s22, 1
          %s300 = smul.addr %s299, 8
          %s301 = scalar_lea.vmem %s0, %s300
        $region48: #{tpu_custom_call.1} parent=43 // pred_fallthru
          _
        // Predicated region
        $region49: #{tpu_custom_call.1} parent=43 // pred_check
          %p302 = pneg %p68
        $region50: #{tpu_custom_call.1} parent=43 // pred_check_branch
          %304 = sbr.rel (%p302) target = $region52
        $region51: #{tpu_custom_call.1} parent=43 // pred_region
          %s305 = sand.u32 %s58, 1
          %s306 = scalar_lea.sflag [#allocation3], %s305
          %s307 = sand.u32 %s58, 1
          %s308 = smul.addr %s307, 8
          %s309 = scalar_lea.vmem [#allocation2], %s308
          %s311 = ssub.s32 128, 128
          %312 = vsyncadd %s306, %s311
          %s313 = smul.addr %s22, 128
          %s314 = scalar_lea.hbm %s1, %s313
          %s316 = sshll.u32 %s309, 4
          %s317 = int_to_ptr.vmem [resolvable:$true] %s316
          %319 = dma.hbm_to_vmem [thread:$0]  %s314, 128, %s317, %s306
        $region52: #{tpu_custom_call.1} parent=43 // pred_fallthru
          _
      $region44: #{tpu_custom_call.1} parent=5 // pred_fallthru
        _
      %p320 = scmp.le.s32.totalorder 1, %s22
      %p321 = scmp.lt.s32.totalorder %s22, 3
      %p322 = pnand %p320, %p321
      %p323 = pneg %p322
      // Predicated region
      $region53: #{tpu_custom_call.1} parent=5 // pred_check
        _
      $region54: #{tpu_custom_call.1} parent=5 // pred_check_branch
        %325 = sbr.rel (%p322) target = $region56
      $region55: #{tpu_custom_call.1} parent=5 // pred_region
        %s326 = ssub.s32 %s22, 1
        %s327 = sand.u32 %s61, 1
        %s328 = scalar_lea.sflag [#allocation3], %s327
        %s329 = sand.u32 %s61, 1
        %s330 = smul.addr %s329, 8
        %s331 = scalar_lea.vmem [#allocation2], %s330
        // Predicated region
        $region57: #{tpu_custom_call.1} parent=55 // pred_check
          %p332 = pneg %p74
        $region58: #{tpu_custom_call.1} parent=55 // pred_check_branch
          %334 = sbr.rel (%p332) target = $region60
        $region59: #{tpu_custom_call.1} parent=55 // pred_region
          %335 = dma.done %s328, 128
        $region60: #{tpu_custom_call.1} parent=55 // pred_fallthru
          _
        // Predicated region
        $region61: #{tpu_custom_call.1} parent=55 // pred_check
          %p336 = pneg %p116
        $region62: #{tpu_custom_call.1} parent=55 // pred_check_branch
          %338 = sbr.rel (%p336) target = $region64
        $region63: #{tpu_custom_call.1} parent=55 // pred_region
          %339 = dma.done [#allocation6], 128
        $region64: #{tpu_custom_call.1} parent=55 // pred_fallthru
          _
        %p340 = scmp.lt.s32.totalorder %s27, 1
        %s341 = scalar_select %p340, %s27, 1
        %s342 = smul.addr %s341, 8
        %s343 = scalar_lea.vmem %s0, %s342
        %p344 = pneg %p48
        %p345 = pneg %p45
        %s346 = sand.u32 %s61, 1
        %s347 = scalar_lea.sflag [#allocation3], %s346
        %s348 = sand.u32 %s61, 1
        %s349 = smul.addr %s348, 8
        %s350 = scalar_lea.vmem [#allocation2], %s349
        %p351 = pneg %p74
        %p352 = pneg %p71
        %p353 = pneg %p95
        %p354 = pneg %p92
        %p355 = pneg %p116
        %p356 = pneg %p113
        %p357 = pneg %p137
        %p358 = pneg %p134
        %p359 = pneg %p158
        %p360 = pneg %p155
        %p361 = pneg %p179
        %p362 = pneg %p176
        %p363 = pneg %p200
        %p364 = pneg %p197
        %p365 = pneg %p221
        %p366 = pneg %p218
        %p367 = pneg %p247
        %p368 = pneg %p244
        %s369 = sand.u32 %s234, 1
        %s370 = scalar_lea.sflag [#allocation4], %s369
        %s371 = sand.u32 %s234, 1
        %s372 = smul.addr %s371, 4
        %s373 = scalar_lea.vmem [#allocation7], %s372
        %p374 = scmp.lt.s32.totalorder %s27, 1
        %s375 = scalar_select %p374, %s27, 1
        %s376 = smul.addr %s375, 8
        %s377 = scalar_lea.vmem %s0, %s376
        %v378 = vld [vmem:[%s377] sm:$0xff]
        %v379 = vld [vmem:[%s331] sm:$0xff]
        %v380 = vlaneseq
        %v381 = vand.u32 %v380, 127
        %vm382 = vcmp.eq.s32.totalorder %v381, 0
        %vm383 = vcmp.eq.s32.totalorder %v381, 127
        %v384 = vld [vmem:[%s2] sm:$0xff]
        %385 = vrot.lane.b32.xlu0 %v378, 1
        %v386 = vpop.permute.xlu0 %385
        %v387 = vsel %vm382, 1, 0
        %vm388 = vcmp.eq.s32.totalorder %v387, 1
        %v389 = vsel %vm388, 0.0, %v386
        %390 = vrot.lane.b32.xlu0 %v378, 127
        %v391 = vpop.permute.xlu0 %390
        %v392 = vsel %vm383, 1, 0
        %vm393 = vcmp.eq.s32.totalorder %v392, 1
        %v394 = vsel %vm393, 0.0, %v391
        %v395 = vld [vmem:[#allocation5] sm:$0xff]
        %396 = vrot.lane.b32.xlu0 %v379, 1
        %v397 = vpop.permute.xlu0 %396
        %v398 = vsel %vm388, 0.0, %v397
        %399 = vrot.lane.b32.xlu0 %v379, 127
        %v400 = vpop.permute.xlu0 %399
        %v401 = vsel %vm393, 0.0, %v400
        %vm402 = vcmask 195584
        %v404 = vsel %vm402, %v395, 0
        %406 = vmatprep.subr.mxu0 0.0
        %407 = vmatpush1.msra.mxu0 %v398
        %408 = vmatprep.subr.mxu0 0.0
        %409 = vmatpush1.msra.mxu0 %v379
        %410 = vmatprep.subr.mxu0 0.0
        %411 = vmatpush1.msra.mxu0 %v401
        %412 = vmatprep.subr.mxu0 0.0
        %413 = vmatpush1.msra.mxu0 0.0
        %414 = vmatprep.subr.mxu0 0.0
        %415 = vmatpush1.msra.mxu0 0.0
        %416 = vmatprep.subr.mxu0 0.0
        %417 = vmatpush1.msra.mxu0 0.0
        %418 = vmatprep.subr.mxu0 0.0
        %419 = vmatpush1.msra.mxu0 0.0
        %420 = vmatprep.subr.mxu0 0.0
        %421 = vmatpush1.msra.mxu0 0.0
        %422 = vmatprep.subr.mxu0 0.0
        %423 = vmatpush1.msra.mxu0 0.0
        %424 = vmatprep.subr.mxu0 0.0
        %425 = vmatpush1.msra.mxu0 0.0
        %426 = vmatprep.subr.mxu0 0.0
        %427 = vmatpush1.msra.mxu0 0.0
        %428 = vmatprep.subr.mxu0 0.0
        %429 = vmatpush1.msra.mxu0 0.0
        %430 = vmatprep.subr.mxu0 0.0
        %431 = vmatpush1.msra.mxu0 0.0
        %432 = vmatprep.subr.mxu0 0.0
        %433 = vmatpush1.msra.mxu0 0.0
        %434 = vmatprep.subr.mxu0 0.0
        %435 = vmatpush1.msra.mxu0 0.0
        %436 = vmatprep.subr.mxu0 0.0
        %437 = vmatpush1.msra.mxu0 0.0
        %438 = vmatprep.subr.mxu0 0.0
        %439 = vmatpush1.msra.mxu0 0.0
        %440 = vmatprep.subr.mxu0 0.0
        %441 = vmatpush1.msra.mxu0 0.0
        %442 = vmatprep.subr.mxu0 0.0
        %443 = vmatpush1.msra.mxu0 0.0
        %444 = vmatprep.subr.mxu0 0.0
        %445 = vmatpush1.msra.mxu0 0.0
        %446 = vmatprep.subr.mxu0 0.0
        %447 = vmatpush1.msra.mxu0 0.0
        %448 = vmatprep.subr.mxu0 0.0
        %449 = vmatpush1.msra.mxu0 0.0
        %450 = vmatprep.subr.mxu0 0.0
        %451 = vmatpush1.msra.mxu0 0.0
        %452 = vmatprep.subr.mxu0 0.0
        %453 = vmatpush1.msra.mxu0 0.0
        %454 = vmatprep.subr.mxu0 0.0
        %455 = vmatpush1.msra.mxu0 0.0
        %456 = vmatprep.subr.mxu0 0.0
        %457 = vmatpush1.msra.mxu0 0.0
        %458 = vmatprep.subr.mxu0 0.0
        %459 = vmatpush1.msra.mxu0 0.0
        %460 = vmatprep.subr.mxu0 0.0
        %461 = vmatpush1.msra.mxu0 0.0
        %462 = vmatprep.subr.mxu0 0.0
        %463 = vmatpush1.msra.mxu0 0.0
        %464 = vmatprep.subr.mxu0 0.0
        %465 = vmatpush1.msra.mxu0 0.0
        %466 = vmatprep.subr.mxu0 0.0
        %467 = vmatpush1.msra.mxu0 0.0
        %468 = vmatprep.subr.mxu0 0.0
        %469 = vmatpush1.msra.mxu0 0.0
        %470 = vmatprep.mubr.f32.mxu0 0.0
        %471 = vmatmul.mubr.f32.gmra.mrb[0].mxu0 %v404
        %v472 = vpop.f32.mrb[0].mxu0
        %v473 = vadd.f32 0.0, %v472
        %v474 = vpop.f32.mrb[0].mxu0
        %475 = vdwg.mxu0
        %v477 = vsel %vm402, %v384, 0
        %479 = vmatprep.subr.mxu0 0.0
        %480 = vmatpush1.msra.mxu0 %v389
        %481 = vmatprep.subr.mxu0 0.0
        %482 = vmatpush1.msra.mxu0 %v378
        %483 = vmatprep.subr.mxu0 0.0
        %484 = vmatpush1.msra.mxu0 %v394
        %485 = vmatprep.subr.mxu0 0.0
        %486 = vmatpush1.msra.mxu0 0.0
        %487 = vmatprep.subr.mxu0 0.0
        %488 = vmatpush1.msra.mxu0 0.0
        %489 = vmatprep.subr.mxu0 0.0
        %490 = vmatpush1.msra.mxu0 0.0
        %491 = vmatprep.subr.mxu0 0.0
        %492 = vmatpush1.msra.mxu0 0.0
        %493 = vmatprep.subr.mxu0 0.0
        %494 = vmatpush1.msra.mxu0 0.0
        %495 = vmatprep.subr.mxu0 0.0
        %496 = vmatpush1.msra.mxu0 0.0
        %497 = vmatprep.subr.mxu0 0.0
        %498 = vmatpush1.msra.mxu0 0.0
        %499 = vmatprep.subr.mxu0 0.0
        %500 = vmatpush1.msra.mxu0 0.0
        %501 = vmatprep.subr.mxu0 0.0
        %502 = vmatpush1.msra.mxu0 0.0
        %503 = vmatprep.subr.mxu0 0.0
        %504 = vmatpush1.msra.mxu0 0.0
        %505 = vmatprep.subr.mxu0 0.0
        %506 = vmatpush1.msra.mxu0 0.0
        %507 = vmatprep.subr.mxu0 0.0
        %508 = vmatpush1.msra.mxu0 0.0
        %509 = vmatprep.subr.mxu0 0.0
        %510 = vmatpush1.msra.mxu0 0.0
        %511 = vmatprep.subr.mxu0 0.0
        %512 = vmatpush1.msra.mxu0 0.0
        %513 = vmatprep.subr.mxu0 0.0
        %514 = vmatpush1.msra.mxu0 0.0
        %515 = vmatprep.subr.mxu0 0.0
        %516 = vmatpush1.msra.mxu0 0.0
        %517 = vmatprep.subr.mxu0 0.0
        %518 = vmatpush1.msra.mxu0 0.0
        %519 = vmatprep.subr.mxu0 0.0
        %520 = vmatpush1.msra.mxu0 0.0
        %521 = vmatprep.subr.mxu0 0.0
        %522 = vmatpush1.msra.mxu0 0.0
        %523 = vmatprep.subr.mxu0 0.0
        %524 = vmatpush1.msra.mxu0 0.0
        %525 = vmatprep.subr.mxu0 0.0
        %526 = vmatpush1.msra.mxu0 0.0
        %527 = vmatprep.subr.mxu0 0.0
        %528 = vmatpush1.msra.mxu0 0.0
        %529 = vmatprep.subr.mxu0 0.0
        %530 = vmatpush1.msra.mxu0 0.0
        %531 = vmatprep.subr.mxu0 0.0
        %532 = vmatpush1.msra.mxu0 0.0
        %533 = vmatprep.subr.mxu0 0.0
        %534 = vmatpush1.msra.mxu0 0.0
        %535 = vmatprep.subr.mxu0 0.0
        %536 = vmatpush1.msra.mxu0 0.0
        %537 = vmatprep.subr.mxu0 0.0
        %538 = vmatpush1.msra.mxu0 0.0
        %539 = vmatprep.subr.mxu0 0.0
        %540 = vmatpush1.msra.mxu0 0.0
        %541 = vmatprep.subr.mxu0 0.0
        %542 = vmatpush1.msra.mxu0 0.0
        %543 = vmatprep.mubr.f32.mxu0 0.0
        %544 = vmatmul.mubr.f32.gmra.mrb[0].mxu0 %v477
        %v545 = vpop.f32.mrb[0].mxu0
        %v546 = vadd.f32 %v473, %v545
        %v547 = vpop.f32.mrb[0].mxu0
        %548 = vdwg.mxu0
        %v549 = vld [vmem:[%s4] sm:$0xff]
        %551 = vset.pattern.permute.xlu0 0
        %552 = vperm.xlu0 %551, %v549
        %v553 = vpop.permute.xlu0 %552
        %v555 = vadd.f32 %v546, %v553
        %vm556 = vcmp.gt.f32.partialorder %v555, 0.0
        %v557 = vmul.f32 %v555, 0.01
        %v558 = vsel %vm556, %v555, %v557
        %v559 = vld [vmem:[%s5] sm:$0xf]
        %560 = vrot.lane.b32.xlu0 %v558, 1
        %v561 = vpop.permute.xlu0 %560
        %v562 = vsel %vm388, 0.0, %v561
        %563 = vrot.lane.b32.xlu0 %v558, 127
        %v564 = vpop.permute.xlu0 %563
        %v565 = vsel %vm393, 0.0, %v564
        %v566 = vld [vmem:[%s6] sm:$0xf]
        %568 = vset.pattern.permute.xlu0 0
        %569 = vperm.xlu0 %568, %v566
        %v570 = vpop.permute.xlu0 %569
        %v573 = vsel %vm402, %v559, 0
        %575 = vmatprep.subr.mxu0 0.0
        %576 = vmatpush1.msra.mxu0 %v562
        %577 = vmatprep.subr.mxu0 0.0
        %578 = vmatpush1.msra.mxu0 %v558
        %579 = vmatprep.subr.mxu0 0.0
        %580 = vmatpush1.msra.mxu0 %v565
        %581 = vmatprep.subr.mxu0 0.0
        %582 = vmatpush1.msra.mxu0 0.0
        %583 = vmatprep.subr.mxu0 0.0
        %584 = vmatpush1.msra.mxu0 0.0
        %585 = vmatprep.subr.mxu0 0.0
        %586 = vmatpush1.msra.mxu0 0.0
        %587 = vmatprep.subr.mxu0 0.0
        %588 = vmatpush1.msra.mxu0 0.0
        %589 = vmatprep.subr.mxu0 0.0
        %590 = vmatpush1.msra.mxu0 0.0
        %591 = vmatprep.subr.mxu0 0.0
        %592 = vmatpush1.msra.mxu0 0.0
        %593 = vmatprep.subr.mxu0 0.0
        %594 = vmatpush1.msra.mxu0 0.0
        %595 = vmatprep.subr.mxu0 0.0
        %596 = vmatpush1.msra.mxu0 0.0
        %597 = vmatprep.subr.mxu0 0.0
        %598 = vmatpush1.msra.mxu0 0.0
        %599 = vmatprep.subr.mxu0 0.0
        %600 = vmatpush1.msra.mxu0 0.0
        %601 = vmatprep.subr.mxu0 0.0
        %602 = vmatpush1.msra.mxu0 0.0
        %603 = vmatprep.subr.mxu0 0.0
        %604 = vmatpush1.msra.mxu0 0.0
        %605 = vmatprep.subr.mxu0 0.0
        %606 = vmatpush1.msra.mxu0 0.0
        %607 = vmatprep.subr.mxu0 0.0
        %608 = vmatpush1.msra.mxu0 0.0
        %609 = vmatprep.subr.mxu0 0.0
        %610 = vmatpush1.msra.mxu0 0.0
        %611 = vmatprep.subr.mxu0 0.0
        %612 = vmatpush1.msra.mxu0 0.0
        %613 = vmatprep.subr.mxu0 0.0
        %614 = vmatpush1.msra.mxu0 0.0
        %615 = vmatprep.subr.mxu0 0.0
        %616 = vmatpush1.msra.mxu0 0.0
        %617 = vmatprep.subr.mxu0 0.0
        %618 = vmatpush1.msra.mxu0 0.0
        %619 = vmatprep.subr.mxu0 0.0
        %620 = vmatpush1.msra.mxu0 0.0
        %621 = vmatprep.subr.mxu0 0.0
        %622 = vmatpush1.msra.mxu0 0.0
        %623 = vmatprep.subr.mxu0 0.0
        %624 = vmatpush1.msra.mxu0 0.0
        %625 = vmatprep.subr.mxu0 0.0
        %626 = vmatpush1.msra.mxu0 0.0
        %627 = vmatprep.subr.mxu0 0.0
        %628 = vmatpush1.msra.mxu0 0.0
        %629 = vmatprep.subr.mxu0 0.0
        %630 = vmatpush1.msra.mxu0 0.0
        %631 = vmatprep.subr.mxu0 0.0
        %632 = vmatpush1.msra.mxu0 0.0
        %633 = vmatprep.subr.mxu0 0.0
        %634 = vmatpush1.msra.mxu0 0.0
        %635 = vmatprep.subr.mxu0 0.0
        %636 = vmatpush1.msra.mxu0 0.0
        %637 = vmatprep.subr.mxu0 0.0
        %638 = vmatpush1.msra.mxu0 0.0
        %639 = vmatprep.mubr.f32.mxu0 0.0
        %640 = vmatmul.mubr.f32.gmra.mrb[0].mxu0 %v573
        %v641 = vpop.f32.mrb[0].mxu0
        %v642 = vadd.f32 %v570, %v641
        %v643 = vpop.f32.mrb[0].mxu0
        %644 = vdwg.mxu0
        %vm645 = vcmp.gt.f32.partialorder %v642, 0.0
        %v646 = vmul.f32 %v642, 0.01
        %v647 = vsel %vm645, %v642, %v646
        %v648 = vld [vmem:[%s7] sm:$0xf]
        %v649 = vld [vmem:[%s8] sm:$0xf]
        %651 = vset.pattern.permute.xlu0 0
        %652 = vperm.xlu0 %651, %v649
        %v653 = vpop.permute.xlu0 %652
        %vm655 = vcmask 64512
        %v657 = vsel %vm655, %v648, 0
        %659 = vmatprep.subr.mxu0 0.0
        %660 = vmatpush1.msra.mxu0 %v378
        %661 = vmatprep.subr.mxu0 0.0
        %662 = vmatpush1.msra.mxu0 0.0
        %663 = vmatprep.subr.mxu0 0.0
        %664 = vmatpush1.msra.mxu0 0.0
        %665 = vmatprep.subr.mxu0 0.0
        %666 = vmatpush1.msra.mxu0 0.0
        %667 = vmatprep.subr.mxu0 0.0
        %668 = vmatpush1.msra.mxu0 0.0
        %669 = vmatprep.subr.mxu0 0.0
        %670 = vmatpush1.msra.mxu0 0.0
        %671 = vmatprep.subr.mxu0 0.0
        %672 = vmatpush1.msra.mxu0 0.0
        %673 = vmatprep.subr.mxu0 0.0
        %674 = vmatpush1.msra.mxu0 0.0
        %675 = vmatprep.subr.mxu0 0.0
        %676 = vmatpush1.msra.mxu0 0.0
        %677 = vmatprep.subr.mxu0 0.0
        %678 = vmatpush1.msra.mxu0 0.0
        %679 = vmatprep.subr.mxu0 0.0
        %680 = vmatpush1.msra.mxu0 0.0
        %681 = vmatprep.subr.mxu0 0.0
        %682 = vmatpush1.msra.mxu0 0.0
        %683 = vmatprep.subr.mxu0 0.0
        %684 = vmatpush1.msra.mxu0 0.0
        %685 = vmatprep.subr.mxu0 0.0
        %686 = vmatpush1.msra.mxu0 0.0
        %687 = vmatprep.subr.mxu0 0.0
        %688 = vmatpush1.msra.mxu0 0.0
        %689 = vmatprep.subr.mxu0 0.0
        %690 = vmatpush1.msra.mxu0 0.0
        %691 = vmatprep.subr.mxu0 0.0
        %692 = vmatpush1.msra.mxu0 0.0
        %693 = vmatprep.subr.mxu0 0.0
        %694 = vmatpush1.msra.mxu0 0.0
        %695 = vmatprep.subr.mxu0 0.0
        %696 = vmatpush1.msra.mxu0 0.0
        %697 = vmatprep.subr.mxu0 0.0
        %698 = vmatpush1.msra.mxu0 0.0
        %699 = vmatprep.subr.mxu0 0.0
        %700 = vmatpush1.msra.mxu0 0.0
        %701 = vmatprep.subr.mxu0 0.0
        %702 = vmatpush1.msra.mxu0 0.0
        %703 = vmatprep.subr.mxu0 0.0
        %704 = vmatpush1.msra.mxu0 0.0
        %705 = vmatprep.subr.mxu0 0.0
        %706 = vmatpush1.msra.mxu0 0.0
        %707 = vmatprep.subr.mxu0 0.0
        %708 = vmatpush1.msra.mxu0 0.0
        %709 = vmatprep.subr.mxu0 0.0
        %710 = vmatpush1.msra.mxu0 0.0
        %711 = vmatprep.subr.mxu0 0.0
        %712 = vmatpush1.msra.mxu0 0.0
        %713 = vmatprep.subr.mxu0 0.0
        %714 = vmatpush1.msra.mxu0 0.0
        %715 = vmatprep.subr.mxu0 0.0
        %716 = vmatpush1.msra.mxu0 0.0
        %717 = vmatprep.subr.mxu0 0.0
        %718 = vmatpush1.msra.mxu0 0.0
        %719 = vmatprep.subr.mxu0 0.0
        %720 = vmatpush1.msra.mxu0 0.0
        %721 = vmatprep.subr.mxu0 0.0
        %722 = vmatpush1.msra.mxu0 0.0
        %723 = vmatprep.mubr.f32.mxu0 0.0
        %724 = vmatmul.mubr.f32.gmra.mrb[0].mxu0 %v657
        %v725 = vpop.f32.mrb[0].mxu0
        %v726 = vadd.f32 %v653, %v725
        %v727 = vpop.f32.mrb[0].mxu0
        %728 = vdwg.mxu0
        %v729 = vadd.f32 %v726, %v647
        %vm730 = vcmp.gt.f32.partialorder %v729, 0.0
        %v731 = vmul.f32 %v729, 0.01
        %v732 = vsel %vm730, %v729, %v731
        %733 = vst [vmem:[%s373] sm:$0xf] %v732
        %s734 = sand.u32 %s234, 1
        %s735 = scalar_lea.sflag [#allocation4], %s734
        %s736 = sand.u32 %s234, 1
        %s737 = smul.addr %s736, 4
        %s738 = scalar_lea.vmem [#allocation7], %s737
        // Predicated region
        $region65: #{tpu_custom_call.1} parent=55 // pred_check
          %p739 = pneg %p244
        $region66: #{tpu_custom_call.1} parent=55 // pred_check_branch
          %741 = sbr.rel (%p739) target = $region68
        $region67: #{tpu_custom_call.1} parent=55 // pred_region
          %s743 = ssub.s32 64, 64
          %744 = vsyncadd %s735, %s743
          %s745 = smul.addr %s27, 64
          %s746 = scalar_lea.hbm %s9, %s745
          %s748 = sshll.u32 %s738, 4
          %s749 = int_to_ptr.vmem [resolvable:$true] %s748
          %751 = dma.vmem_to_hbm [thread:$0]  %s749, 64, %s746, %s735
        $region68: #{tpu_custom_call.1} parent=55 // pred_fallthru
          _
      $region56: #{tpu_custom_call.1} parent=5 // pred_fallthru
        _
      %p752 = scmp.le.s32.totalorder 2, %s22
      // Predicated region
      $region69: #{tpu_custom_call.1} parent=5 // pred_check
        %p753 = pneg %p752
      $region70: #{tpu_custom_call.1} parent=5 // pred_check_branch
        %755 = sbr.rel (%p753) target = $region72
      $region71: #{tpu_custom_call.1} parent=5 // pred_region
        %s756 = ssub.s32 %s22, 2
        // Predicated region
        $region73: #{tpu_custom_call.1} parent=71 // pred_check
          %p757 = pneg %p250
        $region74: #{tpu_custom_call.1} parent=71 // pred_check_branch
          %759 = sbr.rel (%p757) target = $region76
        $region75: #{tpu_custom_call.1} parent=71 // pred_region
          %s760 = sand.u32 %s235, 1
          %s761 = scalar_lea.sflag [#allocation4], %s760
          %s762 = sand.u32 %s235, 1
          %s763 = smul.addr %s762, 4
          %s764 = scalar_lea.vmem [#allocation7], %s763
          %765 = dma.done %s761, 64
        $region76: #{tpu_custom_call.1} parent=71 // pred_fallthru
          _
      $region72: #{tpu_custom_call.1} parent=5 // pred_fallthru
        _
    $region6: #{tpu_custom_call.1} parent=1 // loop_footer
      %s26 = sadd.s32 1, %s22
    $region7: #{tpu_custom_call.1} parent=1 // loop_footer_branch
      %21 = sbr.rel target = $region3
    $region8: #{tpu_custom_call.1} parent=1 // loop_exit
      _
    %766 = vsyncpa [#allocation3], 1
    %s767 = scalar_lea.sflag [#allocation3], 1
    %768 = vsyncpa %s767, 1
    %769 = vsyncpa [#allocation6], 1
    %770 = vsyncpa [#allocation4], 1
    %s771 = scalar_lea.sflag [#allocation4], 1
    %772 = vsyncpa %s771, 1

</llo_original>
